<compile_context>
chip_gen: v7x
topology: tpu7x:2x2x1
jax: 0.10.0
libtpu: 0.0.40
codegen_flags: <defaults>
</compile_context>

<pallas_src>
import functools

import jax
import jax.numpy as jnp
import numpy as np
from jax.experimental import pallas as pl
from jax.experimental.pallas import tpu as pltpu

_BN_EPS = 1e-5
_LANE = 128        # lane width: pad channel / K dims to multiples of this
_SUB_PACK = 16     # sublane packing for bf16 tiles


def _round_up(x, m):
    return (x + m - 1) // m * m


def _hw_tuned():
    """(tile_m, vmem_limit) per generation; conservative (v7x-safe) fallback."""
    tile_m, vmem_limit = 512, 48 * 1024 * 1024          # fits v7x's 64 MiB / TC
    try:
        vmem = pltpu.get_tpu_info().vmem_capacity_bytes
        if vmem >= 100 * 1024 * 1024:                    # v5e / v6e: 128 MiB VMEM
            tile_m, vmem_limit = 1024, 96 * 1024 * 1024
    except Exception:
        pass
    return tile_m, vmem_limit


_TILE_M, _VMEM_LIMIT = _hw_tuned()

_COMPILER_PARAMS = pltpu.CompilerParams(
    dimension_semantics=("parallel",),      # M tiles are independent -> megacore split
    vmem_limit_bytes=_VMEM_LIMIT,
)


def _pad2d(a, rows, cols):
    r, c = a.shape
    return jnp.pad(a, ((0, rows - r), (0, cols - c)))


def _row_spec(tile_m, ncols):
    return pl.BlockSpec((tile_m, ncols), lambda i: (i, 0))


def _full_spec(shape):
    return pl.BlockSpec(shape, lambda i: (0,) * len(shape))


# ---------------------------------------------------------------------------
# Pallas kernels
# ---------------------------------------------------------------------------
def _matmul_stats_kernel(p_ref, w_ref, z_ref, stats_ref):
    """z = P_tile @ W (bf16 in, f32 MXU acc); store z in bf16, emit per-tile
    per-channel (sum, sum of squares) computed from the f32 accumulator.

    Padded M rows / K cols / C cols are zero, so they contribute nothing to the sums.
    No conv bias: a bias before batch-norm is cancelled by mean subtraction.
    """
    z = jnp.dot(p_ref[...], w_ref[...], preferred_element_type=jnp.float32)
    z_ref[...] = z.astype(z_ref.dtype)                       # bf16 store (halves HBM)
    col_sum = jnp.sum(z, axis=0, keepdims=True)              # (1, C) f32
    col_sq = jnp.sum(z * z, axis=0, keepdims=True)           # (1, C) f32
    stats_ref[...] = jnp.concatenate([col_sum, col_sq], axis=0)[None]   # (1, 2, C)


def _bn_relu_kernel(z_ref, ss_ref, o_ref):
    """o = relu(scale * z + shift)   (fused BN with precomputed scale/shift)."""
    y = z_ref[...].astype(jnp.float32) * ss_ref[0:1, :] + ss_ref[1:2, :]
    o_ref[...] = jnp.maximum(y, 0.0).astype(o_ref.dtype)


def _bn_add_relu_kernel(z_ref, ss_ref, sc_ref, o_ref):
    """o = relu(scale * z + shift + shortcut)   (identity shortcut, bf16 operands)."""
    y = (z_ref[...].astype(jnp.float32) * ss_ref[0:1, :] + ss_ref[1:2, :]
         + sc_ref[...].astype(jnp.float32))
    o_ref[...] = jnp.maximum(y, 0.0).astype(o_ref.dtype)


def _bn_proj_add_relu_kernel(z_ref, ss_ref, xs_ref, w3_ref, o_ref):
    """o = relu(scale * z + shift + Xs @ W3)   (1x1 projection shortcut fused in;
    the projection bias b3 is folded into `shift` by the wrapper)."""
    sc = jnp.dot(xs_ref[...], w3_ref[...], preferred_element_type=jnp.float32)
    y = z_ref[...].astype(jnp.float32) * ss_ref[0:1, :] + ss_ref[1:2, :] + sc
    o_ref[...] = jnp.maximum(y, 0.0).astype(o_ref.dtype)


# ---------------------------------------------------------------------------
# pallas_call wrappers
# ---------------------------------------------------------------------------
def _conv_stats(p, w, tile_m):
    """Tiled conv-as-matmul + per-tile BN statistics.
    Returns (z[M_pad, C_pad] bf16, stats[num_tiles, 2, C_pad] f32)."""
    m_pad, k_pad = p.shape
    c_pad = w.shape[1]
    nt = m_pad // tile_m
    return pl.pallas_call(
        _matmul_stats_kernel,
        out_shape=(jax.ShapeDtypeStruct((m_pad, c_pad), jnp.bfloat16),
                   jax.ShapeDtypeStruct((nt, 2, c_pad), jnp.float32)),
        grid_spec=pltpu.PrefetchScalarGridSpec(
            num_scalar_prefetch=0,
            grid=(nt,),
            in_specs=[_row_spec(tile_m, k_pad),
                      _full_spec((k_pad, c_pad))],           # weights stay resident
            out_specs=[pl.BlockSpec((tile_m, c_pad), lambda i: (i, 0)),
                       pl.BlockSpec((1, 2, c_pad), lambda i: (i, 0, 0))]),
        compiler_params=_COMPILER_PARAMS,
    )(p, w)


def _apply_call(kernel, tile_m, out_dtype, in_specs, args):
    """Tiled elementwise epilogue (BN apply + shortcut + ReLU)."""
    m_pad, c_pad = args[0].shape
    nt = m_pad // tile_m
    return pl.pallas_call(
        kernel,
        out_shape=jax.ShapeDtypeStruct((m_pad, c_pad), out_dtype),
        grid_spec=pltpu.PrefetchScalarGridSpec(
            num_scalar_prefetch=0,
            grid=(nt,),
            in_specs=in_specs,
            out_specs=_row_spec(tile_m, c_pad)),
        compiler_params=_COMPILER_PARAMS,
    )(*args)


def _bn_scale_shift(stats, m_true, gamma, beta, extra_shift=None):
    """Tiny cross-tile reduction (plain JAX): per-channel mean/var -> fused scale/shift.
    Returns a (2, C_pad) f32 slab: row0=scale, row1=shift."""
    s = jnp.sum(stats, axis=0)                      # (2, C_pad)
    mean = s[0] / m_true
    var = s[1] / m_true - mean * mean               # biased variance (training-mode BN)
    scale = gamma * jax.lax.rsqrt(var + _BN_EPS)
    shift = beta - mean * scale
    if extra_shift is not None:                     # fold 1x1-conv bias into the shift
        shift = shift + extra_shift
    return jnp.stack([scale, shift], axis=0)


# ---------------------------------------------------------------------------
# Glue: im2col (layout transform only; no math)
# ---------------------------------------------------------------------------
def _im2col(x_nhwc, ksize, stride, pad):
    n, h, w, c = x_nhwc.shape
    xp = jnp.pad(x_nhwc, ((0, 0), (pad, pad), (pad, pad), (0, 0)))
    ho = (h + 2 * pad - ksize) // stride + 1
    wo = (w + 2 * pad - ksize) // stride + 1
    cols = []
    for kh in range(ksize):
        for kw in range(ksize):
            cols.append(xp[:, kh:kh + stride * ho:stride, kw:kw + stride * wo:stride, :])
    patches = jnp.concatenate(cols, axis=-1)        # (N, Ho, Wo, K*K*C), (kh,kw,c) order
    return patches.reshape(n * ho * wo, ksize * ksize * c), (n, ho, wo)


# ---------------------------------------------------------------------------
# Residual module (parameters initialized deterministically in-script)
# ---------------------------------------------------------------------------
class ResidualPallas:
    def __init__(self, input_channels, num_channels, use_1x1conv=False, strides=1,
                 key=jax.random.PRNGKey(42)):
        self.cin = input_channels
        self.cout = num_channels
        self.use_1x1conv = use_1x1conv
        self.strides = strides
        self.cpad = _round_up(num_channels, _LANE)
        self.cin_pad = _round_up(input_channels, _LANE)
        self.k1_pad = _round_up(9 * input_channels, _LANE)
        self.k2_pad = _round_up(9 * num_channels, _LANE)

        k1, k2, k3, k4, k5, k6 = jax.random.split(key, 6)
        # conv weights stored HWIO (KH, KW, Cin, Cout); biases kept for the reference
        self.w1 = (jax.random.normal(k1, (3, 3, input_channels, num_channels)) * 0.1).astype(jnp.float32)
        self.b1 = (jax.random.normal(k2, (num_channels,)) * 0.01).astype(jnp.float32)
        self.w2 = (jax.random.normal(k3, (3, 3, num_channels, num_channels)) * 0.1).astype(jnp.float32)
        self.b2 = (jax.random.normal(k4, (num_channels,)) * 0.01).astype(jnp.float32)
        if use_1x1conv:
            self.w3 = (jax.random.normal(k5, (1, 1, input_channels, num_channels)) * 0.1).astype(jnp.float32)
            self.b3 = (jax.random.normal(k6, (num_channels,)) * 0.01).astype(jnp.float32)
        else:
            self.w3 = None
            self.b3 = None
        # BatchNorm affine params: PyTorch defaults (gamma=1, beta=0)
        self.g1 = jnp.ones((num_channels,), jnp.float32)
        self.be1 = jnp.zeros((num_channels,), jnp.float32)
        self.g2 = jnp.ones((num_channels,), jnp.float32)
        self.be2 = jnp.zeros((num_channels,), jnp.float32)

        # --- kernel-side operands: padded once to 128-lane multiples, cast to bf16 ---
        # b1/b2 are intentionally NOT passed to the kernels (cancelled by BN's mean
        # subtraction); b3 is folded into the BN shift at call time.
        cp = self.cpad
        self.w1m = _pad2d(self.w1.reshape(9 * input_channels, num_channels),
                          self.k1_pad, cp).astype(jnp.bfloat16)
        self.w2m = _pad2d(self.w2.reshape(9 * num_channels, num_channels),
                          self.k2_pad, cp).astype(jnp.bfloat16)
        if use_1x1conv:
            self.w3m = _pad2d(self.w3.reshape(input_channels, num_channels),
                              self.cin_pad, cp).astype(jnp.bfloat16)
            self.b3p = jnp.pad(self.b3, (0, cp - num_channels))
        # Pad gamma/beta with ZEROS so padded channels produce exactly zero.
        self.g1p = jnp.pad(self.g1, (0, cp - num_channels))
        self.be1p = jnp.pad(self.be1, (0, cp - num_channels))
        self.g2p = jnp.pad(self.g2, (0, cp - num_channels))
        self.be2p = jnp.pad(self.be2, (0, cp - num_channels))

    @functools.partial(jax.jit, static_argnums=0)
    def __call__(self, x_nchw):
        x = jnp.transpose(x_nchw, (0, 2, 3, 1)).astype(jnp.float32)   # NCHW -> NHWC

        # ---- stage 1: relu(bn1(conv1(x))) --------------------------------
        p1, (n_, ho, wo) = _im2col(x, 3, self.strides, 1)
        m = n_ * ho * wo
        # tile_m: big for HBM roofline, but capped at ceil(m/2) so there are >= 2
        # tiles whenever possible (keeps both v7x TensorCores busy); multiple of the
        # bf16 sublane packing so block shapes are layout-legal.
        half = _round_up(max(1, -(-m // 2)), _SUB_PACK)
        tile_m = max(_SUB_PACK, min(_TILE_M, half))
        m_pad = _round_up(m, tile_m)

        p1p = _pad2d(p1, m_pad, self.k1_pad).astype(jnp.bfloat16)
        z1, st1 = _conv_stats(p1p, self.w1m, tile_m)                   # z1 bf16
        ss1 = _bn_scale_shift(st1, m, self.g1p, self.be1p)
        y1 = _apply_call(
            _bn_relu_kernel, tile_m, jnp.bfloat16,
            [_row_spec(tile_m, self.cpad), _full_spec((2, self.cpad))],
            (z1, ss1))

        # ---- stage 2: relu(bn2(conv2(y1)) + shortcut) ---------------------
        y1_nhwc = y1[:m, :self.cout].reshape(n_, ho, wo, self.cout)    # bf16
        p2, _ = _im2col(y1_nhwc, 3, 1, 1)
        p2p = _pad2d(p2, m_pad, self.k2_pad)                           # bf16 already
        z2, st2 = _conv_stats(p2p, self.w2m, tile_m)                   # z2 bf16

        if self.use_1x1conv:
            # 1x1 projection shortcut: bias folded into BN shift, matmul fused into
            # the apply kernel (single epilogue pass).
            ss2 = _bn_scale_shift(st2, m, self.g2p, self.be2p, extra_shift=self.b3p)
            xs = x[:, ::self.strides, ::self.strides, :].reshape(m, self.cin)
            xsp = _pad2d(xs, m_pad, self.cin_pad).astype(jnp.bfloat16)
            out = _apply_call(
                _bn_proj_add_relu_kernel, tile_m, jnp.float32,
                [_row_spec(tile_m, self.cpad), _full_spec((2, self.cpad)),
                 _row_spec(tile_m, self.cin_pad), _full_spec((self.cin_pad, self.cpad))],
                (z2, ss2, xsp, self.w3m))
        else:
            assert self.strides == 1 and self.cin == self.cout, \
                "identity shortcut requires stride==1 and cin==cout"
            ss2 = _bn_scale_shift(st2, m, self.g2p, self.be2p)
            # bf16 shortcut halves the epilogue's load bytes; in-kernel math stays f32.
            sc = _pad2d(x.reshape(m, self.cin).astype(jnp.bfloat16), m_pad, self.cpad)
            out = _apply_call(
                _bn_add_relu_kernel, tile_m, jnp.float32,
                [_row_spec(tile_m, self.cpad), _full_spec((2, self.cpad)),
                 _row_spec(tile_m, self.cpad)],
                (z2, ss2, sc))

        out = out[:m, :self.cout].reshape(n_, ho, wo, self.cout)
        return jnp.transpose(out, (0, 3, 1, 2))             # NHWC -> NCHW


# ---------------------------------------------------------------------------
# Pure-JAX reference (mirrors the PyTorch forward, training-mode BatchNorm)
# ---------------------------------------------------------------------------
def _ref_forward(mod: ResidualPallas, x_nchw):
    def conv(x, w_hwio, b, stride, pad):
        y = jax.lax.conv_general_dilated(
            x, w_hwio, (stride, stride), [(pad, pad), (pad, pad)],
            dimension_numbers=('NCHW', 'HWIO', 'NCHW'))
        return y + b.reshape(1, -1, 1, 1)

    def bn(y, g, be):
        mean = y.mean(axis=(0, 2, 3), keepdims=True)
        var = ((y - mean) ** 2).mean(axis=(0, 2, 3), keepdims=True)
        return g.reshape(1, -1, 1, 1) * (y - mean) / jnp.sqrt(var + _BN_EPS) + be.reshape(1, -1, 1, 1)

    y = jax.nn.relu(bn(conv(x_nchw, mod.w1, mod.b1, mod.strides, 1), mod.g1, mod.be1))
    y = bn(conv(y, mod.w2, mod.b2, 1, 1), mod.g2, mod.be2)
    if mod.use_1x1conv:
        x_nchw = conv(x_nchw, mod.w3, mod.b3, mod.strides, 0)
    return jax.nn.relu(y + x_nchw)


# ---------------------------------------------------------------------------
if __name__ == "__main__":
    key = jax.random.PRNGKey(0)
    x = jax.random.normal(key, (2, 4, 16, 16), dtype=jnp.float32)   # NCHW

    # Tolerances reflect bf16 matmul inputs + bf16 z/shortcut storage
    # (f32 MXU accumulation, f32 BN/ReLU epilogue math).
    # Config A: projection shortcut + stride 2 (downsampling block)
    block_a = ResidualPallas(4, 8, use_1x1conv=True, strides=2,
                             key=jax.random.PRNGKey(1))
    out_a = jax.block_until_ready(block_a(x))
    ref_a = jax.block_until_ready(_ref_forward(block_a, x))
    np.testing.assert_allclose(np.asarray(out_a), np.asarray(ref_a), rtol=3e-2, atol=3e-2)
    assert out_a.shape == (2, 8, 8, 8)

    # Config B: identity shortcut (cin == cout, stride 1) -> 2 M-tiles,
    # exercises the cross-tile BatchNorm reduction path.
    block_b = ResidualPallas(4, 4, use_1x1conv=False, strides=1,
                             key=jax.random.PRNGKey(2))
    out_b = jax.block_until_ready(block_b(x))
    ref_b = jax.block_until_ready(_ref_forward(block_b, x))
    np.testing.assert_allclose(np.asarray(out_b), np.asarray(ref_b), rtol=3e-2, atol=3e-2)
    assert out_b.shape == (2, 4, 16, 16)

    print("KERNEL_OK")
</pallas_src>

<mosaic_0001>
module attributes {stable_mosaic.version = 11 : i64} {
  func.func @_matmul_stats_kernel(%arg0: i32, %arg1: memref<64x128xbf16, #tpu.memory_space<vmem>>, %arg2: memref<128x128xbf16, #tpu.memory_space<vmem>>, %arg3: memref<64x128xbf16, #tpu.memory_space<vmem>>, %arg4: memref<1x2x128xf32, #tpu.memory_space<vmem>>) attributes {dimension_semantics = [#tpu.dimension_semantics<parallel>], iteration_bounds = array<i64: 2>, scalar_prefetch = 0 : i64, scratch_operands = 0 : i64, tpu.core_type = #tpu.core_type<tc>, window_params = [{transform_indices = @transform_0, window_bounds = array<i64: 64, 128>}, {pipeline_mode = #tpu.pipeline_mode<synchronous>, transform_indices = @transform_1, window_bounds = array<i64: 128, 128>}, {transform_indices = @transform_2, window_bounds = array<i64: 64, 128>}, {transform_indices = @transform_3, window_bounds = array<i64: 1, 2, 128>}]} {
    %c0 = arith.constant 0 : index
    %c0_0 = arith.constant 0 : index
    %0 = vector.load %arg1[%c0, %c0_0] : memref<64x128xbf16, #tpu.memory_space<vmem>>, vector<64x128xbf16>
    %c0_1 = arith.constant 0 : index
    %c0_2 = arith.constant 0 : index
    %1 = vector.load %arg2[%c0_1, %c0_2] : memref<128x128xbf16, #tpu.memory_space<vmem>>, vector<128x128xbf16>
    %cst = arith.constant dense<0.000000e+00> : vector<64x128xf32>
    %2 = tpu.matmul %0, %1, %cst {dimension_numbers = #tpu.dot_dimension_numbers<[1], [0], [0], [1], [0, 0, 1, 1], [], []>} : vector<64x128xbf16>, vector<128x128xbf16>, vector<64x128xf32> -> vector<64x128xf32>
    %3 = arith.truncf %2 : vector<64x128xf32> to vector<64x128xbf16>
    %c0_3 = arith.constant 0 : index
    %c0_4 = arith.constant 0 : index
    %4 = vector.load %arg3[%c0_3, %c0_4] : memref<64x128xbf16, #tpu.memory_space<vmem>>, vector<64x128xbf16>
    tpu.vector_store %arg3[%c0_3, %c0_4], %3 {strides = array<i32>} : memref<64x128xbf16, #tpu.memory_space<vmem>>, vector<64x128xbf16>,
    %cst_5 = arith.constant dense<0.000000e+00> : vector<128xf32>
    %5 = vector.multi_reduction <add>, %2, %cst_5 [0] : vector<64x128xf32> to vector<128xf32>
    %6 = vector.shape_cast %5 : vector<128xf32> to vector<1x128xf32>
    %7 = arith.mulf %2, %2 : vector<64x128xf32>
    %cst_6 = arith.constant dense<0.000000e+00> : vector<128xf32>
    %8 = vector.multi_reduction <add>, %7, %cst_6 [0] : vector<64x128xf32> to vector<128xf32>
    %9 = vector.shape_cast %8 : vector<128xf32> to vector<1x128xf32>
    %10 = tpu.concatenate %6, %9 in 0 : vector<1x128xf32>, vector<1x128xf32> -> vector<2x128xf32>
    %11 = vector.shape_cast %10 : vector<2x128xf32> to vector<1x2x128xf32>
    %c0_7 = arith.constant 0 : index
    %c0_8 = arith.constant 0 : index
    %c0_9 = arith.constant 0 : index
    %12 = vector.load %arg4[%c0_7, %c0_8, %c0_9] : memref<1x2x128xf32, #tpu.memory_space<vmem>>, vector<1x2x128xf32>
    tpu.vector_store %arg4[%c0_7, %c0_8, %c0_9], %11 {strides = array<i32>} : memref<1x2x128xf32, #tpu.memory_space<vmem>>, vector<1x2x128xf32>,
    return
  }
  func.func @transform_0(%arg0: i32) -> (i32, i32) {
    %c0_i32 = arith.constant 0 : i32
    %c0_i32_0 = arith.constant 0 : i32
    return %arg0, %c0_i32 : i32, i32
  }
  func.func @transform_1(%arg0: i32) -> (i32, i32) {
    %c0_i32 = arith.constant 0 : i32
    %c0_i32_0 = arith.constant 0 : i32
    %c0_i32_1 = arith.constant 0 : i32
    return %c0_i32, %c0_i32_0 : i32, i32
  }
  func.func @transform_2(%arg0: i32) -> (i32, i32) {
    %c0_i32 = arith.constant 0 : i32
    %c0_i32_0 = arith.constant 0 : i32
    return %arg0, %c0_i32 : i32, i32
  }
  func.func @transform_3(%arg0: i32) -> (i32, i32, i32) {
    %c0_i32 = arith.constant 0 : i32
    %c0_i32_0 = arith.constant 0 : i32
    %c0_i32_1 = arith.constant 0 : i32
    return %arg0, %c0_i32, %c0_i32_0 : i32, i32, i32
  }
}

module attributes {stable_mosaic.version = 11 : i64} {
  func.func @_bn_relu_kernel(%arg0: i32, %arg1: memref<64x128xbf16, #tpu.memory_space<vmem>>, %arg2: memref<2x128xf32, #tpu.memory_space<vmem>>, %arg3: memref<64x128xbf16, #tpu.memory_space<vmem>>) attributes {dimension_semantics = [#tpu.dimension_semantics<parallel>], iteration_bounds = array<i64: 2>, scalar_prefetch = 0 : i64, scratch_operands = 0 : i64, tpu.core_type = #tpu.core_type<tc>, window_params = [{transform_indices = @transform_0, window_bounds = array<i64: 64, 128>}, {pipeline_mode = #tpu.pipeline_mode<synchronous>, transform_indices = @transform_1, window_bounds = array<i64: 2, 128>}, {transform_indices = @transform_2, window_bounds = array<i64: 64, 128>}]} {
    %c0 = arith.constant 0 : index
    %c0_0 = arith.constant 0 : index
    %0 = vector.load %arg1[%c0, %c0_0] : memref<64x128xbf16, #tpu.memory_space<vmem>>, vector<64x128xbf16>
    %1 = arith.extf %0 : vector<64x128xbf16> to vector<64x128xf32>
    %c0_1 = arith.constant 0 : index
    %c0_2 = arith.constant 0 : index
    %2 = vector.load %arg2[%c0_1, %c0_2] : memref<2x128xf32, #tpu.memory_space<vmem>>, vector<1x128xf32>
    %3 = vector.broadcast %2 : vector<1x128xf32> to vector<64x128xf32>
    %4 = arith.mulf %1, %3 : vector<64x128xf32>
    %c1 = arith.constant 1 : index
    %c0_3 = arith.constant 0 : index
    %5 = vector.load %arg2[%c1, %c0_3] : memref<2x128xf32, #tpu.memory_space<vmem>>, vector<1x128xf32>
    %6 = vector.broadcast %5 : vector<1x128xf32> to vector<64x128xf32>
    %7 = arith.addf %4, %6 : vector<64x128xf32>
    %cst = arith.constant 0.000000e+00 : f32
    %8 = vector.broadcast %cst : f32 to vector<64x128xf32>
    %9 = arith.maximumf %7, %8 : vector<64x128xf32>
    %10 = arith.truncf %9 : vector<64x128xf32> to vector<64x128xbf16>
    %c0_4 = arith.constant 0 : index
    %c0_5 = arith.constant 0 : index
    %11 = vector.load %arg3[%c0_4, %c0_5] : memref<64x128xbf16, #tpu.memory_space<vmem>>, vector<64x128xbf16>
    tpu.vector_store %arg3[%c0_4, %c0_5], %10 {strides = array<i32>} : memref<64x128xbf16, #tpu.memory_space<vmem>>, vector<64x128xbf16>,
    return
  }
  func.func @transform_0(%arg0: i32) -> (i32, i32) {
    %c0_i32 = arith.constant 0 : i32
    %c0_i32_0 = arith.constant 0 : i32
    return %arg0, %c0_i32 : i32, i32
  }
  func.func @transform_1(%arg0: i32) -> (i32, i32) {
    %c0_i32 = arith.constant 0 : i32
    %c0_i32_0 = arith.constant 0 : i32
    %c0_i32_1 = arith.constant 0 : i32
    return %c0_i32, %c0_i32_0 : i32, i32
  }
  func.func @transform_2(%arg0: i32) -> (i32, i32) {
    %c0_i32 = arith.constant 0 : i32
    %c0_i32_0 = arith.constant 0 : i32
    return %arg0, %c0_i32 : i32, i32
  }
}

module attributes {stable_mosaic.version = 11 : i64} {
  func.func @_bn_proj_add_relu_kernel(%arg0: i32, %arg1: memref<64x128xbf16, #tpu.memory_space<vmem>>, %arg2: memref<2x128xf32, #tpu.memory_space<vmem>>, %arg3: memref<64x128xbf16, #tpu.memory_space<vmem>>, %arg4: memref<128x128xbf16, #tpu.memory_space<vmem>>, %arg5: memref<64x128xf32, #tpu.memory_space<vmem>>) attributes {dimension_semantics = [#tpu.dimension_semantics<parallel>], iteration_bounds = array<i64: 2>, scalar_prefetch = 0 : i64, scratch_operands = 0 : i64, tpu.core_type = #tpu.core_type<tc>, window_params = [{transform_indices = @transform_0, window_bounds = array<i64: 64, 128>}, {pipeline_mode = #tpu.pipeline_mode<synchronous>, transform_indices = @transform_1, window_bounds = array<i64: 2, 128>}, {transform_indices = @transform_2, window_bounds = array<i64: 64, 128>}, {pipeline_mode = #tpu.pipeline_mode<synchronous>, transform_indices = @transform_3, window_bounds = array<i64: 128, 128>}, {transform_indices = @transform_4, window_bounds = array<i64: 64, 128>}]} {
    %c0 = arith.constant 0 : index
    %c0_0 = arith.constant 0 : index
    %0 = vector.load %arg3[%c0, %c0_0] : memref<64x128xbf16, #tpu.memory_space<vmem>>, vector<64x128xbf16>
    %c0_1 = arith.constant 0 : index
    %c0_2 = arith.constant 0 : index
    %1 = vector.load %arg4[%c0_1, %c0_2] : memref<128x128xbf16, #tpu.memory_space<vmem>>, vector<128x128xbf16>
    %cst = arith.constant dense<0.000000e+00> : vector<64x128xf32>
    %2 = tpu.matmul %0, %1, %cst {dimension_numbers = #tpu.dot_dimension_numbers<[1], [0], [0], [1], [0, 0, 1, 1], [], []>} : vector<64x128xbf16>, vector<128x128xbf16>, vector<64x128xf32> -> vector<64x128xf32>
    %c0_3 = arith.constant 0 : index
    %c0_4 = arith.constant 0 : index
    %3 = vector.load %arg1[%c0_3, %c0_4] : memref<64x128xbf16, #tpu.memory_space<vmem>>, vector<64x128xbf16>
    %4 = arith.extf %3 : vector<64x128xbf16> to vector<64x128xf32>
    %c0_5 = arith.constant 0 : index
    %c0_6 = arith.constant 0 : index
    %5 = vector.load %arg2[%c0_5, %c0_6] : memref<2x128xf32, #tpu.memory_space<vmem>>, vector<1x128xf32>
    %6 = vector.broadcast %5 : vector<1x128xf32> to vector<64x128xf32>
    %7 = arith.mulf %4, %6 : vector<64x128xf32>
    %c1 = arith.constant 1 : index
    %c0_7 = arith.constant 0 : index
    %8 = vector.load %arg2[%c1, %c0_7] : memref<2x128xf32, #tpu.memory_space<vmem>>, vector<1x128xf32>
    %9 = vector.broadcast %8 : vector<1x128xf32> to vector<64x128xf32>
    %10 = arith.addf %7, %9 : vector<64x128xf32>
    %11 = arith.addf %10, %2 : vector<64x128xf32>
    %cst_8 = arith.constant 0.000000e+00 : f32
    %12 = vector.broadcast %cst_8 : f32 to vector<64x128xf32>
    %13 = arith.maximumf %11, %12 : vector<64x128xf32>
    %c0_9 = arith.constant 0 : index
    %c0_10 = arith.constant 0 : index
    %14 = vector.load %arg5[%c0_9, %c0_10] : memref<64x128xf32, #tpu.memory_space<vmem>>, vector<64x128xf32>
    tpu.vector_store %arg5[%c0_9, %c0_10], %13 {strides = array<i32>} : memref<64x128xf32, #tpu.memory_space<vmem>>, vector<64x128xf32>,
    return
  }
  func.func @transform_0(%arg0: i32) -> (i32, i32) {
    %c0_i32 = arith.constant 0 : i32
    %c0_i32_0 = arith.constant 0 : i32
    return %arg0, %c0_i32 : i32, i32
  }
  func.func @transform_1(%arg0: i32) -> (i32, i32) {
    %c0_i32 = arith.constant 0 : i32
    %c0_i32_0 = arith.constant 0 : i32
    %c0_i32_1 = arith.constant 0 : i32
    return %c0_i32, %c0_i32_0 : i32, i32
  }
  func.func @transform_2(%arg0: i32) -> (i32, i32) {
    %c0_i32 = arith.constant 0 : i32
    %c0_i32_0 = arith.constant 0 : i32
    return %arg0, %c0_i32 : i32, i32
  }
  func.func @transform_3(%arg0: i32) -> (i32, i32) {
    %c0_i32 = arith.constant 0 : i32
    %c0_i32_0 = arith.constant 0 : i32
    %c0_i32_1 = arith.constant 0 : i32
    return %c0_i32, %c0_i32_0 : i32, i32
  }
  func.func @transform_4(%arg0: i32) -> (i32, i32) {
    %c0_i32 = arith.constant 0 : i32
    %c0_i32_0 = arith.constant 0 : i32
    return %arg0, %c0_i32 : i32, i32
  }
}

</mosaic_0001>

<llo_original>
// kernel: a_call__.5
$region0: #{a_call__.5}
  #allocation0 [shape = 'u32[]', space=smem, size = 0x4, offset = 0x4, fixed_abs, tag = 'smem constant byte address 0x4 - core index']
  #allocation1 [shape = 'u32[144,128]{1,0:T(1,128)}', space=vmem, size = 0x12000, scoped, tag = 'internal scratch']
  %s0 = inlined_call_operand.vmem [shape: bf16[128,128], index: 0, kind: input, shape index: {}]
  %s1 = inlined_call_operand.vmem [shape: f32[2,128], index: 1, kind: input, shape index: {}]
  %s2 = inlined_call_operand.vmem [shape: bf16[128,128], index: 2, kind: output, shape index: {}]
  %s3 = sld [smem:[#allocation0]]
  $region41: #{a_call__.5} parent=0
    _
  %s5 = ssub.s32 1, %s3
  %s6 = scalar_select 0, %s5, %s3
  loop: start=0, step=1, limit=4
  $region2: #{a_call__.5} parent=0 // loop_pre_header
    _
  $region3: #{a_call__.5} parent=0 // loop_header
    %s8 = sphi 0, %s12
    %p9 = scmp.ge.s32.totalorder %s8, 4
    %s18 = sphi 0, %s20
    %s21 = sphi 0, %s18
    %s22 = sphi 0, %s21
    %s38 = sphi 0, %s22
    %s42 = sphi 0, %s42
    %s44 = sphi 0, %s42
    %s45 = sphi 0, %s44
    %s59 = sphi 0, %s45
    %s65 = sphi 0, %s67
    %s68 = sphi 0, %s65
    %s69 = sphi 0, %s68
    %s85 = sphi 0, %s69
  $region4: #{a_call__.5} parent=0 // loop_header_branch
    %11 = sbr.rel (%p9) target = $region8
  $region5: #{a_call__.5} parent=0 // loop_body
    %s13 = ssub.s32 %s8, 1
    %s14 = ssub.s32 %s8, 2
    %s15 = sadd.s32 %s8, 1
    %s16 = ssub.s32 %s8, %s15
    %p17 = scmp.eq.s32.totalorder %s16, 0
    %s19 = sadd.s32 %s18, 1
    %s20 = scalar_select %p17, %s18, %s19
    %p23 = pneg %p17
    %p24 = scmp.eq.s32.totalorder %s8, 1
    %p25 = por %p23, %p24
    %p26 = scmp.ne.s32.totalorder %s18, %s21
    %p27 = scmp.eq.s32.totalorder %s8, 0
    %p28 = por %p26, %p27
    %p29 = scmp.ne.s32.totalorder %s18, %s21
    %p30 = scmp.eq.s32.totalorder %s13, 1
    %p31 = por %p29, %p30
    %p32 = scmp.ne.s32.totalorder %s21, %s22
    %p33 = scmp.eq.s32.totalorder %s13, 0
    %p34 = por %p32, %p33
    %p35 = scmp.ne.s32.totalorder %s21, %s22
    %p36 = scmp.eq.s32.totalorder %s14, 1
    %p37 = por %p35, %p36
    %p39 = scmp.ne.s32.totalorder %s22, %s38
    %p40 = scmp.eq.s32.totalorder %s14, 0
    %p41 = por %p39, %p40
    %s43 = sadd.s32 %s42, 1
    %p46 = scmp.eq.s32.totalorder %s8, 1
    %p47 = scmp.ne.s32.totalorder %s42, %s44
    %p48 = scmp.eq.s32.totalorder %s8, 0
    %p49 = por %p47, %p48
    %p50 = scmp.ne.s32.totalorder %s42, %s44
    %p51 = scmp.eq.s32.totalorder %s13, 1
    %p52 = por %p50, %p51
    %p53 = scmp.ne.s32.totalorder %s44, %s45
    %p54 = scmp.eq.s32.totalorder %s13, 0
    %p55 = por %p53, %p54
    %p56 = scmp.ne.s32.totalorder %s44, %s45
    %p57 = scmp.eq.s32.totalorder %s14, 1
    %p58 = por %p56, %p57
    %p60 = scmp.ne.s32.totalorder %s45, %s59
    %p61 = scmp.eq.s32.totalorder %s14, 0
    %p62 = por %p60, %p61
    %s63 = ssub.s32 %s8, %s15
    %p64 = scmp.eq.s32.totalorder %s63, 0
    %s66 = sadd.s32 %s65, 1
    %s67 = scalar_select %p64, %s65, %s66
    %p70 = pneg %p64
    %p71 = scmp.eq.s32.totalorder %s8, 1
    %p72 = por %p70, %p71
    %p73 = scmp.ne.s32.totalorder %s65, %s68
    %p74 = scmp.eq.s32.totalorder %s8, 0
    %p75 = por %p73, %p74
    %p76 = scmp.ne.s32.totalorder %s65, %s68
    %p77 = scmp.eq.s32.totalorder %s13, 1
    %p78 = por %p76, %p77
    %p79 = scmp.ne.s32.totalorder %s68, %s69
    %p80 = scmp.eq.s32.totalorder %s13, 0
    %p81 = por %p79, %p80
    %p82 = scmp.ne.s32.totalorder %s68, %s69
    %p83 = scmp.eq.s32.totalorder %s14, 1
    %p84 = por %p82, %p83
    %p86 = scmp.ne.s32.totalorder %s69, %s85
    %p87 = scmp.eq.s32.totalorder %s14, 0
    %p88 = por %p86, %p87
    %p89 = scmp.le.s32.totalorder 1, %s8
    %p90 = scmp.lt.s32.totalorder %s8, 3
    %p91 = pnand %p89, %p90
    %p92 = pneg %p91
    // Predicated region
    $region9: #{a_call__.5} parent=5 // pred_check
      _
    $region10: #{a_call__.5} parent=5 // pred_check_branch
      %94 = sbr.rel (%p91) target = $region12
    $region11: #{a_call__.5} parent=5 // pred_region
      %s95 = ssub.s32 %s8, 1
      // Predicated region
      $region13: #{a_call__.5} parent=11 // pred_check
        %p96 = pneg %p55
      $region14: #{a_call__.5} parent=11 // pred_check_branch
        %98 = sbr.rel (%p96) target = $region16
      $region15: #{a_call__.5} parent=11 // pred_region
        _
      $region16: #{a_call__.5} parent=11 // pred_fallthru
        _
    $region12: #{a_call__.5} parent=5 // pred_fallthru
      _
    %p99 = scmp.lt.s32.totalorder %s8, 2
    // Predicated region
    $region17: #{a_call__.5} parent=5 // pred_check
      %p100 = pneg %p99
    $region18: #{a_call__.5} parent=5 // pred_check_branch
      %102 = sbr.rel (%p100) target = $region20
    $region19: #{a_call__.5} parent=5 // pred_region
      // Predicated region
      $region21: #{a_call__.5} parent=19 // pred_check
        %p103 = pneg %p28
      $region22: #{a_call__.5} parent=19 // pred_check_branch
        %105 = sbr.rel (%p103) target = $region24
      $region23: #{a_call__.5} parent=19 // pred_region
        %s106 = smul.u32 8, %s8
        %p107 = scmp.lt.s32.totalorder %s106, 15
        %s108 = scalar_select %p107, %s106, 15
        %s109 = smul.addr %s108, 4
        %s110 = scalar_lea.vmem %s0, %s109
        %s111 = smul.u32 8, %s8
      $region24: #{a_call__.5} parent=19 // pred_fallthru
        _
    $region20: #{a_call__.5} parent=5 // pred_fallthru
      _
    %p112 = scmp.le.s32.totalorder 1, %s8
    %p113 = scmp.lt.s32.totalorder %s8, 3
    %p114 = pnand %p112, %p113
    %p115 = pneg %p114
    // Predicated region
    $region25: #{a_call__.5} parent=5 // pred_check
      _
    $region26: #{a_call__.5} parent=5 // pred_check_branch
      %117 = sbr.rel (%p114) target = $region28
    $region27: #{a_call__.5} parent=5 // pred_region
      %s118 = ssub.s32 %s8, 1
      %s119 = smul.u32 8, %s13
      %p120 = scmp.lt.s32.totalorder %s119, 15
      %s121 = scalar_select %p120, %s119, 15
      %s122 = smul.addr %s121, 4
      %s123 = scalar_lea.vmem %s0, %s122
      %p124 = pneg %p34
      %p125 = pneg %p31
      %p126 = pneg %p55
      %p127 = pneg %p52
      %p128 = pneg %p81
      %p129 = pneg %p78
      %s130 = smul.u32 8, %s13
      %p131 = scmp.lt.s32.totalorder %s130, 15
      %s132 = scalar_select %p131, %s130, 15
      %s133 = smul.addr %s132, 4
      %s134 = scalar_lea.vmem %s2, %s133
      %s135 = smul.u32 8, %s13
      %p136 = scmp.lt.s32.totalorder %s135, 15
      %s137 = scalar_select %p136, %s135, 15
      %s138 = smul.addr %s137, 4
      %s139 = scalar_lea.vmem %s0, %s138
      %s140 = smul.u32 8, %s13
      %s141 = smul.u32 8, %s13
      %p142 = scmp.lt.s32.totalorder %s141, 15
      %s143 = scalar_select %p142, %s141, 15
      %s144 = smul.addr %s143, 4
      %s145 = scalar_lea.vmem %s2, %s144
      %s146 = smul.u32 8, %s13
      %v147 = vld [vmem:[%s139] sm:$0xf]
      %v148 = vld [vmem:[%s139 + $0x4] sm:$0xf]
      %v149 = vld [vmem:[%s139 + $0x8] sm:$0xf]
      %v150 = vld [vmem:[%s139 + $0xc] sm:$0xf]
      %v151 = vld [vmem:[%s139 + $0x10] sm:$0xf]
      %v152 = vld [vmem:[%s139 + $0x14] sm:$0xf]
      %v153 = vld [vmem:[%s139 + $0x18] sm:$0xf]
      %v154 = vld [vmem:[%s139 + $0x1c] sm:$0xf]
      %v155 = vunpack.c.l.bf16 %v147
      %v156 = vunpack.c.l.bf16 %v148
      %v157 = vunpack.c.l.bf16 %v149
      %v158 = vunpack.c.l.bf16 %v150
      %v159 = vunpack.c.l.bf16 %v151
      %v160 = vunpack.c.l.bf16 %v152
      %v161 = vunpack.c.l.bf16 %v153
      %v162 = vunpack.c.l.bf16 %v154
      %v163 = vld [vmem:[%s1] sm:$0x1]
      %v164 = vlaneseq
      %v165 = vshrl.u32 %v164, 7
      %v166 = vsub.s32 0, %v165
      %v167 = vrot.slane %v163, %v166
      %v168 = vmul.f32 %v155, %v167
      %v169 = vmul.f32 %v156, %v167
      %v170 = vmul.f32 %v157, %v167
      %v171 = vmul.f32 %v158, %v167
      %v172 = vmul.f32 %v159, %v167
      %v173 = vmul.f32 %v160, %v167
      %v174 = vmul.f32 %v161, %v167
      %v175 = vmul.f32 %v162, %v167
      %v176 = vld [vmem:[%s1 + $0x1] sm:$0x1]
      %v177 = vlaneseq
      %v178 = vshrl.u32 %v177, 7
      %v179 = vsub.s32 0, %v178
      %v180 = vrot.slane %v176, %v179
      %v181 = vadd.f32 %v168, %v180
      %v182 = vadd.f32 %v169, %v180
      %v183 = vadd.f32 %v170, %v180
      %v184 = vadd.f32 %v171, %v180
      %v185 = vadd.f32 %v172, %v180
      %v186 = vadd.f32 %v173, %v180
      %v187 = vadd.f32 %v174, %v180
      %v188 = vadd.f32 %v175, %v180
      %v189 = vmax.f32 %v181, 0.0
      %v190 = vmax.f32 %v182, 0.0
      %v191 = vmax.f32 %v183, 0.0
      %v192 = vmax.f32 %v184, 0.0
      %v193 = vmax.f32 %v185, 0.0
      %v194 = vmax.f32 %v186, 0.0
      %v195 = vmax.f32 %v187, 0.0
      %v196 = vmax.f32 %v188, 0.0
      %v197 = vpack.c.bf16 %v190, %v189
      %v198 = vpack.c.bf16 %v192, %v191
      %v199 = vpack.c.bf16 %v194, %v193
      %v200 = vpack.c.bf16 %v196, %v195
      %v205 = vunpack.c.l.b16 %v197
      %v206 = vunpack.c.h.b16 %v197
      %v207 = vunpack.c.l.b16 %v198
      %v208 = vunpack.c.h.b16 %v198
      %v209 = vunpack.c.l.b16 %v199
      %v210 = vunpack.c.h.b16 %v199
      %v211 = vunpack.c.l.b16 %v200
      %v212 = vunpack.c.h.b16 %v200
      %v213 = vpack.c.b16 %v205, %v205
      %v214 = vpack.c.b16 %v206, %v206
      %v215 = vpack.c.b16 %v207, %v207
      %v216 = vpack.c.b16 %v208, %v208
      %v217 = vpack.c.b16 %v209, %v209
      %v218 = vpack.c.b16 %v210, %v210
      %v219 = vpack.c.b16 %v211, %v211
      %v220 = vpack.c.b16 %v212, %v212
      %229 = vst [vmem:[%s145] sm:$0xf] %v213
      %230 = vst [vmem:[%s145 + $0x4] sm:$0xf] %v214
      %231 = vst [vmem:[%s145 + $0x8] sm:$0xf] %v215
      %232 = vst [vmem:[%s145 + $0xc] sm:$0xf] %v216
      %233 = vst [vmem:[%s145 + $0x10] sm:$0xf] %v217
      %234 = vst [vmem:[%s145 + $0x14] sm:$0xf] %v218
      %235 = vst [vmem:[%s145 + $0x18] sm:$0xf] %v219
      %236 = vst [vmem:[%s145 + $0x1c] sm:$0xf] %v220
      %s237 = smul.u32 8, %s13
      %p238 = scmp.lt.s32.totalorder %s237, 15
      %s239 = scalar_select %p238, %s237, 15
      %s240 = smul.addr %s239, 4
      %s241 = scalar_lea.vmem %s2, %s240
      // Predicated region
      $region29: #{a_call__.5} parent=27 // pred_check
        %p242 = pneg %p78
      $region30: #{a_call__.5} parent=27 // pred_check_branch
        %244 = sbr.rel (%p242) target = $region32
      $region31: #{a_call__.5} parent=27 // pred_region
        %s245 = smul.u32 8, %s13
      $region32: #{a_call__.5} parent=27 // pred_fallthru
        _
    $region28: #{a_call__.5} parent=5 // pred_fallthru
      _
    %p246 = scmp.le.s32.totalorder 2, %s8
    // Predicated region
    $region33: #{a_call__.5} parent=5 // pred_check
      %p247 = pneg %p246
    $region34: #{a_call__.5} parent=5 // pred_check_branch
      %249 = sbr.rel (%p247) target = $region36
    $region35: #{a_call__.5} parent=5 // pred_region
      %s250 = ssub.s32 %s8, 2
      // Predicated region
      $region37: #{a_call__.5} parent=35 // pred_check
        %p251 = pneg %p84
      $region38: #{a_call__.5} parent=35 // pred_check_branch
        %253 = sbr.rel (%p251) target = $region40
      $region39: #{a_call__.5} parent=35 // pred_region
        %s254 = smul.u32 8, %s14
        %p255 = scmp.lt.s32.totalorder %s254, 15
        %s256 = scalar_select %p255, %s254, 15
        %s257 = smul.addr %s256, 4
        %s258 = scalar_lea.vmem %s2, %s257
      $region40: #{a_call__.5} parent=35 // pred_fallthru
        _
    $region36: #{a_call__.5} parent=5 // pred_fallthru
      _
  $region6: #{a_call__.5} parent=0 // loop_footer
    %s12 = sadd.s32 1, %s8
  $region7: #{a_call__.5} parent=0 // loop_footer_branch
    %7 = sbr.rel target = $region3
  $region8: #{a_call__.5} parent=0 // loop_exit
    _

// kernel: a_call__.4
$region0: #{a_call__.4}
  #allocation0 [shape = 'u32[]', space=smem, size = 0x4, offset = 0x4, fixed_abs, tag = 'smem constant byte address 0x4 - core index']
  #allocation1 [shape = 'u32[144,128]{1,0:T(1,128)}', space=vmem, size = 0x12000, scoped, tag = 'internal scratch']
  %s0 = inlined_call_operand.vmem [shape: bf16[128,128], index: 0, kind: input, shape index: {}]
  %s1 = inlined_call_operand.vmem [shape: bf16[128,128], index: 1, kind: input, shape index: {}]
  %s2 = inlined_call_operand.vmem [shape: bf16[128,128], index: 2, kind: output, shape index: {0}]
  %s3 = inlined_call_operand.vmem [shape: f32[2,2,128], index: 3, kind: output, shape index: {1}]
  %4 = xla_tuple %s2, %s3
  %s5 = sld [smem:[#allocation0]]
  $region49: #{a_call__.4} parent=0
    _
  %s7 = ssub.s32 1, %s5
  %s8 = scalar_select 0, %s7, %s5
  loop: start=0, step=1, limit=4
  $region2: #{a_call__.4} parent=0 // loop_pre_header
    _
  $region3: #{a_call__.4} parent=0 // loop_header
    %s10 = sphi 0, %s14
    %p11 = scmp.ge.s32.totalorder %s10, 4
    %s20 = sphi 0, %s22
    %s23 = sphi 0, %s20
    %s24 = sphi 0, %s23
    %s40 = sphi 0, %s24
    %s44 = sphi 0, %s44
    %s46 = sphi 0, %s44
    %s47 = sphi 0, %s46
    %s61 = sphi 0, %s47
    %s67 = sphi 0, %s69
    %s70 = sphi 0, %s67
    %s71 = sphi 0, %s70
    %s87 = sphi 0, %s71
    %s93 = sphi 0, %s95
    %s96 = sphi 0, %s93
    %s97 = sphi 0, %s96
    %s113 = sphi 0, %s97
  $region4: #{a_call__.4} parent=0 // loop_header_branch
    %13 = sbr.rel (%p11) target = $region8
  $region5: #{a_call__.4} parent=0 // loop_body
    %s15 = ssub.s32 %s10, 1
    %s16 = ssub.s32 %s10, 2
    %s17 = sadd.s32 %s10, 1
    %s18 = ssub.s32 %s10, %s17
    %p19 = scmp.eq.s32.totalorder %s18, 0
    %s21 = sadd.s32 %s20, 1
    %s22 = scalar_select %p19, %s20, %s21
    %p25 = pneg %p19
    %p26 = scmp.eq.s32.totalorder %s10, 1
    %p27 = por %p25, %p26
    %p28 = scmp.ne.s32.totalorder %s20, %s23
    %p29 = scmp.eq.s32.totalorder %s10, 0
    %p30 = por %p28, %p29
    %p31 = scmp.ne.s32.totalorder %s20, %s23
    %p32 = scmp.eq.s32.totalorder %s15, 1
    %p33 = por %p31, %p32
    %p34 = scmp.ne.s32.totalorder %s23, %s24
    %p35 = scmp.eq.s32.totalorder %s15, 0
    %p36 = por %p34, %p35
    %p37 = scmp.ne.s32.totalorder %s23, %s24
    %p38 = scmp.eq.s32.totalorder %s16, 1
    %p39 = por %p37, %p38
    %p41 = scmp.ne.s32.totalorder %s24, %s40
    %p42 = scmp.eq.s32.totalorder %s16, 0
    %p43 = por %p41, %p42
    %s45 = sadd.s32 %s44, 1
    %p48 = scmp.eq.s32.totalorder %s10, 1
    %p49 = scmp.ne.s32.totalorder %s44, %s46
    %p50 = scmp.eq.s32.totalorder %s10, 0
    %p51 = por %p49, %p50
    %p52 = scmp.ne.s32.totalorder %s44, %s46
    %p53 = scmp.eq.s32.totalorder %s15, 1
    %p54 = por %p52, %p53
    %p55 = scmp.ne.s32.totalorder %s46, %s47
    %p56 = scmp.eq.s32.totalorder %s15, 0
    %p57 = por %p55, %p56
    %p58 = scmp.ne.s32.totalorder %s46, %s47
    %p59 = scmp.eq.s32.totalorder %s16, 1
    %p60 = por %p58, %p59
    %p62 = scmp.ne.s32.totalorder %s47, %s61
    %p63 = scmp.eq.s32.totalorder %s16, 0
    %p64 = por %p62, %p63
    %s65 = ssub.s32 %s10, %s17
    %p66 = scmp.eq.s32.totalorder %s65, 0
    %s68 = sadd.s32 %s67, 1
    %s69 = scalar_select %p66, %s67, %s68
    %p72 = pneg %p66
    %p73 = scmp.eq.s32.totalorder %s10, 1
    %p74 = por %p72, %p73
    %p75 = scmp.ne.s32.totalorder %s67, %s70
    %p76 = scmp.eq.s32.totalorder %s10, 0
    %p77 = por %p75, %p76
    %p78 = scmp.ne.s32.totalorder %s67, %s70
    %p79 = scmp.eq.s32.totalorder %s15, 1
    %p80 = por %p78, %p79
    %p81 = scmp.ne.s32.totalorder %s70, %s71
    %p82 = scmp.eq.s32.totalorder %s15, 0
    %p83 = por %p81, %p82
    %p84 = scmp.ne.s32.totalorder %s70, %s71
    %p85 = scmp.eq.s32.totalorder %s16, 1
    %p86 = por %p84, %p85
    %p88 = scmp.ne.s32.totalorder %s71, %s87
    %p89 = scmp.eq.s32.totalorder %s16, 0
    %p90 = por %p88, %p89
    %s91 = ssub.s32 %s10, %s17
    %p92 = scmp.eq.s32.totalorder %s91, 0
    %s94 = sadd.s32 %s93, 1
    %s95 = scalar_select %p92, %s93, %s94
    %p98 = pneg %p92
    %p99 = scmp.eq.s32.totalorder %s10, 1
    %p100 = por %p98, %p99
    %p101 = scmp.ne.s32.totalorder %s93, %s96
    %p102 = scmp.eq.s32.totalorder %s10, 0
    %p103 = por %p101, %p102
    %p104 = scmp.ne.s32.totalorder %s93, %s96
    %p105 = scmp.eq.s32.totalorder %s15, 1
    %p106 = por %p104, %p105
    %p107 = scmp.ne.s32.totalorder %s96, %s97
    %p108 = scmp.eq.s32.totalorder %s15, 0
    %p109 = por %p107, %p108
    %p110 = scmp.ne.s32.totalorder %s96, %s97
    %p111 = scmp.eq.s32.totalorder %s16, 1
    %p112 = por %p110, %p111
    %p114 = scmp.ne.s32.totalorder %s97, %s113
    %p115 = scmp.eq.s32.totalorder %s16, 0
    %p116 = por %p114, %p115
    %p117 = scmp.le.s32.totalorder 1, %s10
    %p118 = scmp.lt.s32.totalorder %s10, 3
    %p119 = pnand %p117, %p118
    %p120 = pneg %p119
    // Predicated region
    $region9: #{a_call__.4} parent=5 // pred_check
      _
    $region10: #{a_call__.4} parent=5 // pred_check_branch
      %122 = sbr.rel (%p119) target = $region12
    $region11: #{a_call__.4} parent=5 // pred_region
      %s123 = ssub.s32 %s10, 1
      // Predicated region
      $region13: #{a_call__.4} parent=11 // pred_check
        %p124 = pneg %p57
      $region14: #{a_call__.4} parent=11 // pred_check_branch
        %126 = sbr.rel (%p124) target = $region16
      $region15: #{a_call__.4} parent=11 // pred_region
        _
      $region16: #{a_call__.4} parent=11 // pred_fallthru
        _
    $region12: #{a_call__.4} parent=5 // pred_fallthru
      _
    %p127 = scmp.lt.s32.totalorder %s10, 2
    // Predicated region
    $region17: #{a_call__.4} parent=5 // pred_check
      %p128 = pneg %p127
    $region18: #{a_call__.4} parent=5 // pred_check_branch
      %130 = sbr.rel (%p128) target = $region20
    $region19: #{a_call__.4} parent=5 // pred_region
      // Predicated region
      $region21: #{a_call__.4} parent=19 // pred_check
        %p131 = pneg %p30
      $region22: #{a_call__.4} parent=19 // pred_check_branch
        %133 = sbr.rel (%p131) target = $region24
      $region23: #{a_call__.4} parent=19 // pred_region
        %s134 = smul.u32 8, %s10
        %p135 = scmp.lt.s32.totalorder %s134, 15
        %s136 = scalar_select %p135, %s134, 15
        %s137 = smul.addr %s136, 4
        %s138 = scalar_lea.vmem %s0, %s137
        %s139 = smul.u32 8, %s10
      $region24: #{a_call__.4} parent=19 // pred_fallthru
        _
    $region20: #{a_call__.4} parent=5 // pred_fallthru
      _
    %p140 = scmp.le.s32.totalorder 1, %s10
    %p141 = scmp.lt.s32.totalorder %s10, 3
    %p142 = pnand %p140, %p141
    %p143 = pneg %p142
    // Predicated region
    $region25: #{a_call__.4} parent=5 // pred_check
      _
    $region26: #{a_call__.4} parent=5 // pred_check_branch
      %145 = sbr.rel (%p142) target = $region28
    $region27: #{a_call__.4} parent=5 // pred_region
      %s146 = ssub.s32 %s10, 1
      %s147 = smul.u32 8, %s15
      %p148 = scmp.lt.s32.totalorder %s147, 15
      %s149 = scalar_select %p148, %s147, 15
      %s150 = smul.addr %s149, 4
      %s151 = scalar_lea.vmem %s0, %s150
      %p152 = pneg %p36
      %p153 = pneg %p33
      %p154 = pneg %p57
      %p155 = pneg %p54
      %p156 = pneg %p83
      %p157 = pneg %p80
      %s158 = smul.u32 8, %s15
      %p159 = scmp.lt.s32.totalorder %s158, 15
      %s160 = scalar_select %p159, %s158, 15
      %s161 = smul.addr %s160, 4
      %s162 = scalar_lea.vmem %s2, %s161
      %p163 = pneg %p109
      %p164 = pneg %p106
      %p165 = scmp.lt.s32.totalorder %s15, 1
      %s166 = scalar_select %p165, %s15, 1
      %s167 = smul.addr %s166, 2
      %s168 = scalar_lea.vmem %s3, %s167
      %s169 = smul.u32 8, %s15
      %p170 = scmp.lt.s32.totalorder %s169, 15
      %s171 = scalar_select %p170, %s169, 15
      %s172 = smul.addr %s171, 4
      %s173 = scalar_lea.vmem %s0, %s172
      %s174 = smul.u32 8, %s15
      %s175 = smul.u32 8, %s15
      %p176 = scmp.lt.s32.totalorder %s175, 15
      %s177 = scalar_select %p176, %s175, 15
      %s178 = smul.addr %s177, 4
      %s179 = scalar_lea.vmem %s2, %s178
      %s180 = smul.u32 8, %s15
      %p181 = scmp.lt.s32.totalorder %s15, 1
      %s182 = scalar_select %p181, %s15, 1
      %s183 = smul.addr %s182, 2
      %s184 = scalar_lea.vmem %s3, %s183
      %v186 = vld [vmem:[%s173] sm:$0xf]
      %v187 = vld [vmem:[%s173 + $0x4] sm:$0xf]
      %v188 = vld [vmem:[%s173 + $0x8] sm:$0xf]
      %v189 = vld [vmem:[%s173 + $0xc] sm:$0xf]
      %v190 = vld [vmem:[%s173 + $0x10] sm:$0xf]
      %v191 = vld [vmem:[%s173 + $0x14] sm:$0xf]
      %v192 = vld [vmem:[%s173 + $0x18] sm:$0xf]
      %v193 = vld [vmem:[%s173 + $0x1c] sm:$0xf]
      %v194 = vld [vmem:[%s1] sm:$0xf]
      %v195 = vld [vmem:[%s1 + $0x4] sm:$0xf]
      %v196 = vld [vmem:[%s1 + $0x8] sm:$0xf]
      %v197 = vld [vmem:[%s1 + $0xc] sm:$0xf]
      %v198 = vld [vmem:[%s1 + $0x10] sm:$0xf]
      %v199 = vld [vmem:[%s1 + $0x14] sm:$0xf]
      %v200 = vld [vmem:[%s1 + $0x18] sm:$0xf]
      %v201 = vld [vmem:[%s1 + $0x1c] sm:$0xf]
      %v202 = vld [vmem:[%s1 + $0x20] sm:$0xf]
      %v203 = vld [vmem:[%s1 + $0x24] sm:$0xf]
      %v204 = vld [vmem:[%s1 + $0x28] sm:$0xf]
      %v205 = vld [vmem:[%s1 + $0x2c] sm:$0xf]
      %v206 = vld [vmem:[%s1 + $0x30] sm:$0xf]
      %v207 = vld [vmem:[%s1 + $0x34] sm:$0xf]
      %v208 = vld [vmem:[%s1 + $0x38] sm:$0xf]
      %v209 = vld [vmem:[%s1 + $0x3c] sm:$0xf]
      %v218 = vunpack.c.l.b16 %v186
      %v219 = vunpack.c.l.b16 %v187
      %v220 = vunpack.c.l.b16 %v188
      %v221 = vunpack.c.l.b16 %v189
      %v222 = vunpack.c.l.b16 %v190
      %v223 = vunpack.c.l.b16 %v191
      %v224 = vunpack.c.l.b16 %v192
      %v225 = vunpack.c.l.b16 %v193
      %v226 = vpack.c.b16 %v219, %v218
      %v227 = vpack.c.b16 %v221, %v220
      %v228 = vpack.c.b16 %v223, %v222
      %v229 = vpack.c.b16 %v225, %v224
      %v250 = vunpack.c.l.b16 %v194
      %v251 = vunpack.c.l.b16 %v195
      %v252 = vunpack.c.l.b16 %v196
      %v253 = vunpack.c.l.b16 %v197
      %v254 = vunpack.c.l.b16 %v198
      %v255 = vunpack.c.l.b16 %v199
      %v256 = vunpack.c.l.b16 %v200
      %v257 = vunpack.c.l.b16 %v201
      %v258 = vunpack.c.l.b16 %v202
      %v259 = vunpack.c.l.b16 %v203
      %v260 = vunpack.c.l.b16 %v204
      %v261 = vunpack.c.l.b16 %v205
      %v262 = vunpack.c.l.b16 %v206
      %v263 = vunpack.c.l.b16 %v207
      %v264 = vunpack.c.l.b16 %v208
      %v265 = vunpack.c.l.b16 %v209
      %v266 = vpack.c.b16 %v251, %v250
      %v267 = vpack.c.b16 %v253, %v252
      %v268 = vpack.c.b16 %v255, %v254
      %v269 = vpack.c.b16 %v257, %v256
      %v270 = vpack.c.b16 %v259, %v258
      %v271 = vpack.c.b16 %v261, %v260
      %v272 = vpack.c.b16 %v263, %v262
      %v273 = vpack.c.b16 %v265, %v264
      %282 = vmatprep.subr.bf16.mxu0 0
      %283 = vmatpush1.bf16.msra.mxu0 %v266
      %284 = vmatprep.subr.bf16.mxu0 0
      %285 = vmatpush1.bf16.msra.mxu0 %v267
      %286 = vmatprep.subr.bf16.mxu0 0
      %287 = vmatpush1.bf16.msra.mxu0 %v268
      %288 = vmatprep.subr.bf16.mxu0 0
      %289 = vmatpush1.bf16.msra.mxu0 %v269
      %290 = vmatprep.subr.bf16.mxu0 0
      %291 = vmatpush1.bf16.msra.mxu0 %v270
      %292 = vmatprep.subr.bf16.mxu0 0
      %293 = vmatpush1.bf16.msra.mxu0 %v271
      %294 = vmatprep.subr.bf16.mxu0 0
      %295 = vmatpush1.bf16.msra.mxu0 %v272
      %296 = vmatprep.subr.bf16.mxu0 0
      %297 = vmatpush1.bf16.msra.mxu0 %v273
      %298 = vmatprep.subr.bf16.mxu0 0
      %299 = vmatpush1.bf16.msra.mxu0 0
      %300 = vmatprep.subr.bf16.mxu0 0
      %301 = vmatpush1.bf16.msra.mxu0 0
      %302 = vmatprep.subr.bf16.mxu0 0
      %303 = vmatpush1.bf16.msra.mxu0 0
      %304 = vmatprep.subr.bf16.mxu0 0
      %305 = vmatpush1.bf16.msra.mxu0 0
      %306 = vmatprep.subr.bf16.mxu0 0
      %307 = vmatpush1.bf16.msra.mxu0 0
      %308 = vmatprep.subr.bf16.mxu0 0
      %309 = vmatpush1.bf16.msra.mxu0 0
      %310 = vmatprep.subr.bf16.mxu0 0
      %311 = vmatpush1.bf16.msra.mxu0 0
      %312 = vmatprep.subr.bf16.mxu0 0
      %313 = vmatpush1.bf16.msra.mxu0 0
      %314 = vmatprep.mubr.bf16.mxu0 0
      %315 = vmatmul.mubr.bf16.gmra.mrb[0].mxu0 %v226
      %v316 = vpop.f32.mrb[0].mxu0
      %v317 = vadd.f32 0.0, %v316
      %v318 = vpop.f32.mrb[0].mxu0
      %v319 = vpop.f32.mrb[0].mxu0
      %v320 = vadd.f32 0.0, %v319
      %v321 = vpop.f32.mrb[0].mxu0
      %322 = vmatprep.mubr.bf16.mxu0 0
      %323 = vmatmul.mubr.bf16.gmra.mrb[0].mxu0 %v227
      %v324 = vpop.f32.mrb[0].mxu0
      %v325 = vadd.f32 0.0, %v324
      %v326 = vpop.f32.mrb[0].mxu0
      %v327 = vpop.f32.mrb[0].mxu0
      %v328 = vadd.f32 0.0, %v327
      %v329 = vpop.f32.mrb[0].mxu0
      %330 = vmatprep.mubr.bf16.mxu0 0
      %331 = vmatmul.mubr.bf16.gmra.mrb[0].mxu0 %v228
      %v332 = vpop.f32.mrb[0].mxu0
      %v333 = vadd.f32 0.0, %v332
      %v334 = vpop.f32.mrb[0].mxu0
      %v335 = vpop.f32.mrb[0].mxu0
      %v336 = vadd.f32 0.0, %v335
      %v337 = vpop.f32.mrb[0].mxu0
      %338 = vmatprep.mubr.bf16.mxu0 0
      %339 = vmatmul.mubr.bf16.gmra.mrb[0].mxu0 %v229
      %v340 = vpop.f32.mrb[0].mxu0
      %v341 = vadd.f32 0.0, %v340
      %v342 = vpop.f32.mrb[0].mxu0
      %v343 = vpop.f32.mrb[0].mxu0
      %v344 = vadd.f32 0.0, %v343
      %v345 = vpop.f32.mrb[0].mxu0
      %346 = vdwg.mxu0
      %v347 = vpack.c.bf16 %v320, %v317
      %v348 = vpack.c.bf16 %v328, %v325
      %v349 = vpack.c.bf16 %v336, %v333
      %v350 = vpack.c.bf16 %v344, %v341
      %v355 = vunpack.c.l.b16 %v347
      %v356 = vunpack.c.h.b16 %v347
      %v357 = vunpack.c.l.b16 %v348
      %v358 = vunpack.c.h.b16 %v348
      %v359 = vunpack.c.l.b16 %v349
      %v360 = vunpack.c.h.b16 %v349
      %v361 = vunpack.c.l.b16 %v350
      %v362 = vunpack.c.h.b16 %v350
      %v363 = vpack.c.b16 %v355, %v355
      %v364 = vpack.c.b16 %v356, %v356
      %v365 = vpack.c.b16 %v357, %v357
      %v366 = vpack.c.b16 %v358, %v358
      %v367 = vpack.c.b16 %v359, %v359
      %v368 = vpack.c.b16 %v360, %v360
      %v369 = vpack.c.b16 %v361, %v361
      %v370 = vpack.c.b16 %v362, %v362
      %379 = vst [vmem:[%s179] sm:$0xf] %v363
      %380 = vst [vmem:[%s179 + $0x4] sm:$0xf] %v364
      %381 = vst [vmem:[%s179 + $0x8] sm:$0xf] %v365
      %382 = vst [vmem:[%s179 + $0xc] sm:$0xf] %v366
      %383 = vst [vmem:[%s179 + $0x10] sm:$0xf] %v367
      %384 = vst [vmem:[%s179 + $0x14] sm:$0xf] %v368
      %385 = vst [vmem:[%s179 + $0x18] sm:$0xf] %v369
      %386 = vst [vmem:[%s179 + $0x1c] sm:$0xf] %v370
      %v387 = vadd.f32 %v317, %v320
      %v388 = vadd.f32 %v387, %v325
      %v389 = vadd.f32 %v388, %v328
      %v390 = vadd.f32 %v389, %v333
      %v391 = vadd.f32 %v390, %v336
      %v392 = vadd.f32 %v391, %v341
      %v393 = vadd.f32 %v392, %v344
      %v394 = vrot.slane %v393, 4
      %v395 = vadd.f32 %v393, %v394
      %v396 = vrot.slane %v395, 2
      %v397 = vadd.f32 %v395, %v396
      %v398 = vrot.slane %v397, 1
      %v399 = vadd.f32 %v397, %v398
      %v400 = vmul.f32 %v317, %v317
      %v401 = vmul.f32 %v320, %v320
      %v402 = vmul.f32 %v325, %v325
      %v403 = vmul.f32 %v328, %v328
      %v404 = vmul.f32 %v333, %v333
      %v405 = vmul.f32 %v336, %v336
      %v406 = vmul.f32 %v341, %v341
      %v407 = vmul.f32 %v344, %v344
      %v408 = vadd.f32 %v400, %v401
      %v409 = vadd.f32 %v408, %v402
      %v410 = vadd.f32 %v409, %v403
      %v411 = vadd.f32 %v410, %v404
      %v412 = vadd.f32 %v411, %v405
      %v413 = vadd.f32 %v412, %v406
      %v414 = vadd.f32 %v413, %v407
      %v415 = vrot.slane %v414, 4
      %v416 = vadd.f32 %v414, %v415
      %v417 = vrot.slane %v416, 2
      %v418 = vadd.f32 %v416, %v417
      %v419 = vrot.slane %v418, 1
      %v420 = vadd.f32 %v418, %v419
      %vm421 = vcmask 1040384
      %v422 = vsel %vm421, %v399, %v420
      %423 = vst [vmem:[%s184] sm:$0x3] %v422
      %s424 = smul.u32 8, %s15
      %p425 = scmp.lt.s32.totalorder %s424, 15
      %s426 = scalar_select %p425, %s424, 15
      %s427 = smul.addr %s426, 4
      %s428 = scalar_lea.vmem %s2, %s427
      %p429 = scmp.lt.s32.totalorder %s15, 1
      %s430 = scalar_select %p429, %s15, 1
      %s431 = smul.addr %s430, 2
      %s432 = scalar_lea.vmem %s3, %s431
      // Predicated region
      $region29: #{a_call__.4} parent=27 // pred_check
        %p433 = pneg %p80
      $region30: #{a_call__.4} parent=27 // pred_check_branch
        %435 = sbr.rel (%p433) target = $region32
      $region31: #{a_call__.4} parent=27 // pred_region
        %s436 = smul.u32 8, %s15
      $region32: #{a_call__.4} parent=27 // pred_fallthru
        _
      // Predicated region
      $region33: #{a_call__.4} parent=27 // pred_check
        %p437 = pneg %p106
      $region34: #{a_call__.4} parent=27 // pred_check_branch
        %439 = sbr.rel (%p437) target = $region36
      $region35: #{a_call__.4} parent=27 // pred_region
        _
      $region36: #{a_call__.4} parent=27 // pred_fallthru
        _
    $region28: #{a_call__.4} parent=5 // pred_fallthru
      _
    %p440 = scmp.le.s32.totalorder 2, %s10
    // Predicated region
    $region37: #{a_call__.4} parent=5 // pred_check
      %p441 = pneg %p440
    $region38: #{a_call__.4} parent=5 // pred_check_branch
      %443 = sbr.rel (%p441) target = $region40
    $region39: #{a_call__.4} parent=5 // pred_region
      %s444 = ssub.s32 %s10, 2
      // Predicated region
      $region41: #{a_call__.4} parent=39 // pred_check
        %p445 = pneg %p86
      $region42: #{a_call__.4} parent=39 // pred_check_branch
        %447 = sbr.rel (%p445) target = $region44
      $region43: #{a_call__.4} parent=39 // pred_region
        %s448 = smul.u32 8, %s16
        %p449 = scmp.lt.s32.totalorder %s448, 15
        %s450 = scalar_select %p449, %s448, 15
        %s451 = smul.addr %s450, 4
        %s452 = scalar_lea.vmem %s2, %s451
      $region44: #{a_call__.4} parent=39 // pred_fallthru
        _
      // Predicated region
      $region45: #{a_call__.4} parent=39 // pred_check
        %p453 = pneg %p112
      $region46: #{a_call__.4} parent=39 // pred_check_branch
        %455 = sbr.rel (%p453) target = $region48
      $region47: #{a_call__.4} parent=39 // pred_region
        %p456 = scmp.lt.s32.totalorder %s16, 1
        %s457 = scalar_select %p456, %s16, 1
        %s458 = smul.addr %s457, 2
        %s459 = scalar_lea.vmem %s3, %s458
      $region48: #{a_call__.4} parent=39 // pred_fallthru
        _
    $region40: #{a_call__.4} parent=5 // pred_fallthru
      _
  $region6: #{a_call__.4} parent=0 // loop_footer
    %s14 = sadd.s32 1, %s10
  $region7: #{a_call__.4} parent=0 // loop_footer_branch
    %9 = sbr.rel target = $region3
  $region8: #{a_call__.4} parent=0 // loop_exit
    _

// kernel: a_call__.7
$region0: #{a_call__.7}
  #allocation0 [shape = 'u32[]', space=smem, size = 0x4, offset = 0x4, fixed_abs, tag = 'smem constant byte address 0x4 - core index']
  #allocation1 [shape = 'u32[144,128]{1,0:T(1,128)}', space=vmem, size = 0x12000, scoped, tag = 'internal scratch']
  %s0 = inlined_call_operand.vmem [shape: bf16[128,128], index: 0, kind: input, shape index: {}]
  %s1 = inlined_call_operand.vmem [shape: f32[2,128], index: 1, kind: input, shape index: {}]
  %s2 = inlined_call_operand.vmem [shape: bf16[128,128], index: 2, kind: input, shape index: {}]
  %s3 = inlined_call_operand.vmem [shape: bf16[128,128], index: 3, kind: input, shape index: {}]
  %s4 = inlined_call_operand.vmem [shape: f32[128,128], index: 4, kind: output, shape index: {}]
  %s5 = sld [smem:[#allocation0]]
  $region49: #{a_call__.7} parent=0
    _
  %s7 = ssub.s32 1, %s5
  %s8 = scalar_select 0, %s7, %s5
  loop: start=0, step=1, limit=4
  $region2: #{a_call__.7} parent=0 // loop_pre_header
    _
  $region3: #{a_call__.7} parent=0 // loop_header
    %s10 = sphi 0, %s14
    %p11 = scmp.ge.s32.totalorder %s10, 4
    %s20 = sphi 0, %s22
    %s23 = sphi 0, %s20
    %s24 = sphi 0, %s23
    %s40 = sphi 0, %s24
    %s44 = sphi 0, %s44
    %s46 = sphi 0, %s44
    %s47 = sphi 0, %s46
    %s61 = sphi 0, %s47
    %s67 = sphi 0, %s69
    %s70 = sphi 0, %s67
    %s71 = sphi 0, %s70
    %s87 = sphi 0, %s71
    %s91 = sphi 0, %s91
    %s93 = sphi 0, %s91
    %s94 = sphi 0, %s93
    %s108 = sphi 0, %s94
    %s114 = sphi 0, %s116
    %s117 = sphi 0, %s114
    %s118 = sphi 0, %s117
    %s134 = sphi 0, %s118
  $region4: #{a_call__.7} parent=0 // loop_header_branch
    %13 = sbr.rel (%p11) target = $region8
  $region5: #{a_call__.7} parent=0 // loop_body
    %s15 = ssub.s32 %s10, 1
    %s16 = ssub.s32 %s10, 2
    %s17 = sadd.s32 %s10, 1
    %s18 = ssub.s32 %s10, %s17
    %p19 = scmp.eq.s32.totalorder %s18, 0
    %s21 = sadd.s32 %s20, 1
    %s22 = scalar_select %p19, %s20, %s21
    %p25 = pneg %p19
    %p26 = scmp.eq.s32.totalorder %s10, 1
    %p27 = por %p25, %p26
    %p28 = scmp.ne.s32.totalorder %s20, %s23
    %p29 = scmp.eq.s32.totalorder %s10, 0
    %p30 = por %p28, %p29
    %p31 = scmp.ne.s32.totalorder %s20, %s23
    %p32 = scmp.eq.s32.totalorder %s15, 1
    %p33 = por %p31, %p32
    %p34 = scmp.ne.s32.totalorder %s23, %s24
    %p35 = scmp.eq.s32.totalorder %s15, 0
    %p36 = por %p34, %p35
    %p37 = scmp.ne.s32.totalorder %s23, %s24
    %p38 = scmp.eq.s32.totalorder %s16, 1
    %p39 = por %p37, %p38
    %p41 = scmp.ne.s32.totalorder %s24, %s40
    %p42 = scmp.eq.s32.totalorder %s16, 0
    %p43 = por %p41, %p42
    %s45 = sadd.s32 %s44, 1
    %p48 = scmp.eq.s32.totalorder %s10, 1
    %p49 = scmp.ne.s32.totalorder %s44, %s46
    %p50 = scmp.eq.s32.totalorder %s10, 0
    %p51 = por %p49, %p50
    %p52 = scmp.ne.s32.totalorder %s44, %s46
    %p53 = scmp.eq.s32.totalorder %s15, 1
    %p54 = por %p52, %p53
    %p55 = scmp.ne.s32.totalorder %s46, %s47
    %p56 = scmp.eq.s32.totalorder %s15, 0
    %p57 = por %p55, %p56
    %p58 = scmp.ne.s32.totalorder %s46, %s47
    %p59 = scmp.eq.s32.totalorder %s16, 1
    %p60 = por %p58, %p59
    %p62 = scmp.ne.s32.totalorder %s47, %s61
    %p63 = scmp.eq.s32.totalorder %s16, 0
    %p64 = por %p62, %p63
    %s65 = ssub.s32 %s10, %s17
    %p66 = scmp.eq.s32.totalorder %s65, 0
    %s68 = sadd.s32 %s67, 1
    %s69 = scalar_select %p66, %s67, %s68
    %p72 = pneg %p66
    %p73 = scmp.eq.s32.totalorder %s10, 1
    %p74 = por %p72, %p73
    %p75 = scmp.ne.s32.totalorder %s67, %s70
    %p76 = scmp.eq.s32.totalorder %s10, 0
    %p77 = por %p75, %p76
    %p78 = scmp.ne.s32.totalorder %s67, %s70
    %p79 = scmp.eq.s32.totalorder %s15, 1
    %p80 = por %p78, %p79
    %p81 = scmp.ne.s32.totalorder %s70, %s71
    %p82 = scmp.eq.s32.totalorder %s15, 0
    %p83 = por %p81, %p82
    %p84 = scmp.ne.s32.totalorder %s70, %s71
    %p85 = scmp.eq.s32.totalorder %s16, 1
    %p86 = por %p84, %p85
    %p88 = scmp.ne.s32.totalorder %s71, %s87
    %p89 = scmp.eq.s32.totalorder %s16, 0
    %p90 = por %p88, %p89
    %s92 = sadd.s32 %s91, 1
    %p95 = scmp.eq.s32.totalorder %s10, 1
    %p96 = scmp.ne.s32.totalorder %s91, %s93
    %p97 = scmp.eq.s32.totalorder %s10, 0
    %p98 = por %p96, %p97
    %p99 = scmp.ne.s32.totalorder %s91, %s93
    %p100 = scmp.eq.s32.totalorder %s15, 1
    %p101 = por %p99, %p100
    %p102 = scmp.ne.s32.totalorder %s93, %s94
    %p103 = scmp.eq.s32.totalorder %s15, 0
    %p104 = por %p102, %p103
    %p105 = scmp.ne.s32.totalorder %s93, %s94
    %p106 = scmp.eq.s32.totalorder %s16, 1
    %p107 = por %p105, %p106
    %p109 = scmp.ne.s32.totalorder %s94, %s108
    %p110 = scmp.eq.s32.totalorder %s16, 0
    %p111 = por %p109, %p110
    %s112 = ssub.s32 %s10, %s17
    %p113 = scmp.eq.s32.totalorder %s112, 0
    %s115 = sadd.s32 %s114, 1
    %s116 = scalar_select %p113, %s114, %s115
    %p119 = pneg %p113
    %p120 = scmp.eq.s32.totalorder %s10, 1
    %p121 = por %p119, %p120
    %p122 = scmp.ne.s32.totalorder %s114, %s117
    %p123 = scmp.eq.s32.totalorder %s10, 0
    %p124 = por %p122, %p123
    %p125 = scmp.ne.s32.totalorder %s114, %s117
    %p126 = scmp.eq.s32.totalorder %s15, 1
    %p127 = por %p125, %p126
    %p128 = scmp.ne.s32.totalorder %s117, %s118
    %p129 = scmp.eq.s32.totalorder %s15, 0
    %p130 = por %p128, %p129
    %p131 = scmp.ne.s32.totalorder %s117, %s118
    %p132 = scmp.eq.s32.totalorder %s16, 1
    %p133 = por %p131, %p132
    %p135 = scmp.ne.s32.totalorder %s118, %s134
    %p136 = scmp.eq.s32.totalorder %s16, 0
    %p137 = por %p135, %p136
    %p138 = scmp.le.s32.totalorder 1, %s10
    %p139 = scmp.lt.s32.totalorder %s10, 3
    %p140 = pnand %p138, %p139
    %p141 = pneg %p140
    // Predicated region
    $region9: #{a_call__.7} parent=5 // pred_check
      _
    $region10: #{a_call__.7} parent=5 // pred_check_branch
      %143 = sbr.rel (%p140) target = $region12
    $region11: #{a_call__.7} parent=5 // pred_region
      %s144 = ssub.s32 %s10, 1
      // Predicated region
      $region13: #{a_call__.7} parent=11 // pred_check
        %p145 = pneg %p57
      $region14: #{a_call__.7} parent=11 // pred_check_branch
        %147 = sbr.rel (%p145) target = $region16
      $region15: #{a_call__.7} parent=11 // pred_region
        _
      $region16: #{a_call__.7} parent=11 // pred_fallthru
        _
      // Predicated region
      $region17: #{a_call__.7} parent=11 // pred_check
        %p148 = pneg %p104
      $region18: #{a_call__.7} parent=11 // pred_check_branch
        %150 = sbr.rel (%p148) target = $region20
      $region19: #{a_call__.7} parent=11 // pred_region
        _
      $region20: #{a_call__.7} parent=11 // pred_fallthru
        _
    $region12: #{a_call__.7} parent=5 // pred_fallthru
      _
    %p151 = scmp.lt.s32.totalorder %s10, 2
    // Predicated region
    $region21: #{a_call__.7} parent=5 // pred_check
      %p152 = pneg %p151
    $region22: #{a_call__.7} parent=5 // pred_check_branch
      %154 = sbr.rel (%p152) target = $region24
    $region23: #{a_call__.7} parent=5 // pred_region
      // Predicated region
      $region25: #{a_call__.7} parent=23 // pred_check
        %p155 = pneg %p30
      $region26: #{a_call__.7} parent=23 // pred_check_branch
        %157 = sbr.rel (%p155) target = $region28
      $region27: #{a_call__.7} parent=23 // pred_region
        %s158 = smul.u32 8, %s10
        %p159 = scmp.lt.s32.totalorder %s158, 15
        %s160 = scalar_select %p159, %s158, 15
        %s161 = smul.addr %s160, 4
        %s162 = scalar_lea.vmem %s0, %s161
        %s163 = smul.u32 8, %s10
      $region28: #{a_call__.7} parent=23 // pred_fallthru
        _
      // Predicated region
      $region29: #{a_call__.7} parent=23 // pred_check
        %p164 = pneg %p77
      $region30: #{a_call__.7} parent=23 // pred_check_branch
        %166 = sbr.rel (%p164) target = $region32
      $region31: #{a_call__.7} parent=23 // pred_region
        %s167 = smul.u32 8, %s10
        %p168 = scmp.lt.s32.totalorder %s167, 15
        %s169 = scalar_select %p168, %s167, 15
        %s170 = smul.addr %s169, 4
        %s171 = scalar_lea.vmem %s2, %s170
        %s172 = smul.u32 8, %s10
      $region32: #{a_call__.7} parent=23 // pred_fallthru
        _
    $region24: #{a_call__.7} parent=5 // pred_fallthru
      _
    %p173 = scmp.le.s32.totalorder 1, %s10
    %p174 = scmp.lt.s32.totalorder %s10, 3
    %p175 = pnand %p173, %p174
    %p176 = pneg %p175
    // Predicated region
    $region33: #{a_call__.7} parent=5 // pred_check
      _
    $region34: #{a_call__.7} parent=5 // pred_check_branch
      %178 = sbr.rel (%p175) target = $region36
    $region35: #{a_call__.7} parent=5 // pred_region
      %s179 = ssub.s32 %s10, 1
      %s180 = smul.u32 8, %s15
      %p181 = scmp.lt.s32.totalorder %s180, 15
      %s182 = scalar_select %p181, %s180, 15
      %s183 = smul.addr %s182, 4
      %s184 = scalar_lea.vmem %s0, %s183
      %p185 = pneg %p36
      %p186 = pneg %p33
      %p187 = pneg %p57
      %p188 = pneg %p54
      %s189 = smul.u32 8, %s15
      %p190 = scmp.lt.s32.totalorder %s189, 15
      %s191 = scalar_select %p190, %s189, 15
      %s192 = smul.addr %s191, 4
      %s193 = scalar_lea.vmem %s2, %s192
      %p194 = pneg %p83
      %p195 = pneg %p80
      %p196 = pneg %p104
      %p197 = pneg %p101
      %p198 = pneg %p130
      %p199 = pneg %p127
      %s200 = smul.u32 8, %s15
      %p201 = scmp.lt.s32.totalorder %s200, 15
      %s202 = scalar_select %p201, %s200, 15
      %s203 = smul.addr %s202, 8
      %s204 = scalar_lea.vmem %s4, %s203
      %s205 = smul.u32 8, %s15
      %p206 = scmp.lt.s32.totalorder %s205, 15
      %s207 = scalar_select %p206, %s205, 15
      %s208 = smul.addr %s207, 4
      %s209 = scalar_lea.vmem %s0, %s208
      %s210 = smul.u32 8, %s15
      %s211 = smul.u32 8, %s15
      %p212 = scmp.lt.s32.totalorder %s211, 15
      %s213 = scalar_select %p212, %s211, 15
      %s214 = smul.addr %s213, 4
      %s215 = scalar_lea.vmem %s2, %s214
      %s216 = smul.u32 8, %s15
      %s217 = smul.u32 8, %s15
      %p218 = scmp.lt.s32.totalorder %s217, 15
      %s219 = scalar_select %p218, %s217, 15
      %s220 = smul.addr %s219, 8
      %s221 = scalar_lea.vmem %s4, %s220
      %s222 = smul.u32 8, %s15
      %v224 = vld [vmem:[%s215] sm:$0xf]
      %v225 = vld [vmem:[%s215 + $0x4] sm:$0xf]
      %v226 = vld [vmem:[%s215 + $0x8] sm:$0xf]
      %v227 = vld [vmem:[%s215 + $0xc] sm:$0xf]
      %v228 = vld [vmem:[%s215 + $0x10] sm:$0xf]
      %v229 = vld [vmem:[%s215 + $0x14] sm:$0xf]
      %v230 = vld [vmem:[%s215 + $0x18] sm:$0xf]
      %v231 = vld [vmem:[%s215 + $0x1c] sm:$0xf]
      %v232 = vld [vmem:[%s3] sm:$0xf]
      %v233 = vld [vmem:[%s3 + $0x4] sm:$0xf]
      %v234 = vld [vmem:[%s3 + $0x8] sm:$0xf]
      %v235 = vld [vmem:[%s3 + $0xc] sm:$0xf]
      %v236 = vld [vmem:[%s3 + $0x10] sm:$0xf]
      %v237 = vld [vmem:[%s3 + $0x14] sm:$0xf]
      %v238 = vld [vmem:[%s3 + $0x18] sm:$0xf]
      %v239 = vld [vmem:[%s3 + $0x1c] sm:$0xf]
      %v240 = vld [vmem:[%s3 + $0x20] sm:$0xf]
      %v241 = vld [vmem:[%s3 + $0x24] sm:$0xf]
      %v242 = vld [vmem:[%s3 + $0x28] sm:$0xf]
      %v243 = vld [vmem:[%s3 + $0x2c] sm:$0xf]
      %v244 = vld [vmem:[%s3 + $0x30] sm:$0xf]
      %v245 = vld [vmem:[%s3 + $0x34] sm:$0xf]
      %v246 = vld [vmem:[%s3 + $0x38] sm:$0xf]
      %v247 = vld [vmem:[%s3 + $0x3c] sm:$0xf]
      %v256 = vunpack.c.l.b16 %v224
      %v257 = vunpack.c.l.b16 %v225
      %v258 = vunpack.c.l.b16 %v226
      %v259 = vunpack.c.l.b16 %v227
      %v260 = vunpack.c.l.b16 %v228
      %v261 = vunpack.c.l.b16 %v229
      %v262 = vunpack.c.l.b16 %v230
      %v263 = vunpack.c.l.b16 %v231
      %v264 = vpack.c.b16 %v257, %v256
      %v265 = vpack.c.b16 %v259, %v258
      %v266 = vpack.c.b16 %v261, %v260
      %v267 = vpack.c.b16 %v263, %v262
      %v288 = vunpack.c.l.b16 %v232
      %v289 = vunpack.c.l.b16 %v233
      %v290 = vunpack.c.l.b16 %v234
      %v291 = vunpack.c.l.b16 %v235
      %v292 = vunpack.c.l.b16 %v236
      %v293 = vunpack.c.l.b16 %v237
      %v294 = vunpack.c.l.b16 %v238
      %v295 = vunpack.c.l.b16 %v239
      %v296 = vunpack.c.l.b16 %v240
      %v297 = vunpack.c.l.b16 %v241
      %v298 = vunpack.c.l.b16 %v242
      %v299 = vunpack.c.l.b16 %v243
      %v300 = vunpack.c.l.b16 %v244
      %v301 = vunpack.c.l.b16 %v245
      %v302 = vunpack.c.l.b16 %v246
      %v303 = vunpack.c.l.b16 %v247
      %v304 = vpack.c.b16 %v289, %v288
      %v305 = vpack.c.b16 %v291, %v290
      %v306 = vpack.c.b16 %v293, %v292
      %v307 = vpack.c.b16 %v295, %v294
      %v308 = vpack.c.b16 %v297, %v296
      %v309 = vpack.c.b16 %v299, %v298
      %v310 = vpack.c.b16 %v301, %v300
      %v311 = vpack.c.b16 %v303, %v302
      %320 = vmatprep.subr.bf16.mxu0 0
      %321 = vmatpush1.bf16.msra.mxu0 %v304
      %322 = vmatprep.subr.bf16.mxu0 0
      %323 = vmatpush1.bf16.msra.mxu0 %v305
      %324 = vmatprep.subr.bf16.mxu0 0
      %325 = vmatpush1.bf16.msra.mxu0 %v306
      %326 = vmatprep.subr.bf16.mxu0 0
      %327 = vmatpush1.bf16.msra.mxu0 %v307
      %328 = vmatprep.subr.bf16.mxu0 0
      %329 = vmatpush1.bf16.msra.mxu0 %v308
      %330 = vmatprep.subr.bf16.mxu0 0
      %331 = vmatpush1.bf16.msra.mxu0 %v309
      %332 = vmatprep.subr.bf16.mxu0 0
      %333 = vmatpush1.bf16.msra.mxu0 %v310
      %334 = vmatprep.subr.bf16.mxu0 0
      %335 = vmatpush1.bf16.msra.mxu0 %v311
      %336 = vmatprep.subr.bf16.mxu0 0
      %337 = vmatpush1.bf16.msra.mxu0 0
      %338 = vmatprep.subr.bf16.mxu0 0
      %339 = vmatpush1.bf16.msra.mxu0 0
      %340 = vmatprep.subr.bf16.mxu0 0
      %341 = vmatpush1.bf16.msra.mxu0 0
      %342 = vmatprep.subr.bf16.mxu0 0
      %343 = vmatpush1.bf16.msra.mxu0 0
      %344 = vmatprep.subr.bf16.mxu0 0
      %345 = vmatpush1.bf16.msra.mxu0 0
      %346 = vmatprep.subr.bf16.mxu0 0
      %347 = vmatpush1.bf16.msra.mxu0 0
      %348 = vmatprep.subr.bf16.mxu0 0
      %349 = vmatpush1.bf16.msra.mxu0 0
      %350 = vmatprep.subr.bf16.mxu0 0
      %351 = vmatpush1.bf16.msra.mxu0 0
      %352 = vmatprep.mubr.bf16.mxu0 0
      %353 = vmatmul.mubr.bf16.gmra.mrb[0].mxu0 %v264
      %v354 = vpop.f32.mrb[0].mxu0
      %v355 = vadd.f32 0.0, %v354
      %v356 = vpop.f32.mrb[0].mxu0
      %v357 = vpop.f32.mrb[0].mxu0
      %v358 = vadd.f32 0.0, %v357
      %v359 = vpop.f32.mrb[0].mxu0
      %360 = vmatprep.mubr.bf16.mxu0 0
      %361 = vmatmul.mubr.bf16.gmra.mrb[0].mxu0 %v265
      %v362 = vpop.f32.mrb[0].mxu0
      %v363 = vadd.f32 0.0, %v362
      %v364 = vpop.f32.mrb[0].mxu0
      %v365 = vpop.f32.mrb[0].mxu0
      %v366 = vadd.f32 0.0, %v365
      %v367 = vpop.f32.mrb[0].mxu0
      %368 = vmatprep.mubr.bf16.mxu0 0
      %369 = vmatmul.mubr.bf16.gmra.mrb[0].mxu0 %v266
      %v370 = vpop.f32.mrb[0].mxu0
      %v371 = vadd.f32 0.0, %v370
      %v372 = vpop.f32.mrb[0].mxu0
      %v373 = vpop.f32.mrb[0].mxu0
      %v374 = vadd.f32 0.0, %v373
      %v375 = vpop.f32.mrb[0].mxu0
      %376 = vmatprep.mubr.bf16.mxu0 0
      %377 = vmatmul.mubr.bf16.gmra.mrb[0].mxu0 %v267
      %v378 = vpop.f32.mrb[0].mxu0
      %v379 = vadd.f32 0.0, %v378
      %v380 = vpop.f32.mrb[0].mxu0
      %v381 = vpop.f32.mrb[0].mxu0
      %v382 = vadd.f32 0.0, %v381
      %v383 = vpop.f32.mrb[0].mxu0
      %384 = vdwg.mxu0
      %v385 = vld [vmem:[%s209] sm:$0xf]
      %v386 = vld [vmem:[%s209 + $0x4] sm:$0xf]
      %v387 = vld [vmem:[%s209 + $0x8] sm:$0xf]
      %v388 = vld [vmem:[%s209 + $0xc] sm:$0xf]
      %v389 = vld [vmem:[%s209 + $0x10] sm:$0xf]
      %v390 = vld [vmem:[%s209 + $0x14] sm:$0xf]
      %v391 = vld [vmem:[%s209 + $0x18] sm:$0xf]
      %v392 = vld [vmem:[%s209 + $0x1c] sm:$0xf]
      %v393 = vunpack.c.l.bf16 %v385
      %v394 = vunpack.c.l.bf16 %v386
      %v395 = vunpack.c.l.bf16 %v387
      %v396 = vunpack.c.l.bf16 %v388
      %v397 = vunpack.c.l.bf16 %v389
      %v398 = vunpack.c.l.bf16 %v390
      %v399 = vunpack.c.l.bf16 %v391
      %v400 = vunpack.c.l.bf16 %v392
      %v401 = vld [vmem:[%s1] sm:$0x1]
      %v402 = vlaneseq
      %v403 = vshrl.u32 %v402, 7
      %v404 = vsub.s32 0, %v403
      %v405 = vrot.slane %v401, %v404
      %v406 = vmul.f32 %v393, %v405
      %v407 = vmul.f32 %v394, %v405
      %v408 = vmul.f32 %v395, %v405
      %v409 = vmul.f32 %v396, %v405
      %v410 = vmul.f32 %v397, %v405
      %v411 = vmul.f32 %v398, %v405
      %v412 = vmul.f32 %v399, %v405
      %v413 = vmul.f32 %v400, %v405
      %v414 = vld [vmem:[%s1 + $0x1] sm:$0x1]
      %v415 = vlaneseq
      %v416 = vshrl.u32 %v415, 7
      %v417 = vsub.s32 0, %v416
      %v418 = vrot.slane %v414, %v417
      %v419 = vadd.f32 %v406, %v418
      %v420 = vadd.f32 %v407, %v418
      %v421 = vadd.f32 %v408, %v418
      %v422 = vadd.f32 %v409, %v418
      %v423 = vadd.f32 %v410, %v418
      %v424 = vadd.f32 %v411, %v418
      %v425 = vadd.f32 %v412, %v418
      %v426 = vadd.f32 %v413, %v418
      %v427 = vadd.f32 %v419, %v355
      %v428 = vadd.f32 %v420, %v358
      %v429 = vadd.f32 %v421, %v363
      %v430 = vadd.f32 %v422, %v366
      %v431 = vadd.f32 %v423, %v371
      %v432 = vadd.f32 %v424, %v374
      %v433 = vadd.f32 %v425, %v379
      %v434 = vadd.f32 %v426, %v382
      %v435 = vmax.f32 %v427, 0.0
      %v436 = vmax.f32 %v428, 0.0
      %v437 = vmax.f32 %v429, 0.0
      %v438 = vmax.f32 %v430, 0.0
      %v439 = vmax.f32 %v431, 0.0
      %v440 = vmax.f32 %v432, 0.0
      %v441 = vmax.f32 %v433, 0.0
      %v442 = vmax.f32 %v434, 0.0
      %443 = vst [vmem:[%s221] sm:$0xff] %v435
      %444 = vst [vmem:[%s221 + $0x8] sm:$0xff] %v436
      %445 = vst [vmem:[%s221 + $0x10] sm:$0xff] %v437
      %446 = vst [vmem:[%s221 + $0x18] sm:$0xff] %v438
      %447 = vst [vmem:[%s221 + $0x20] sm:$0xff] %v439
      %448 = vst [vmem:[%s221 + $0x28] sm:$0xff] %v440
      %449 = vst [vmem:[%s221 + $0x30] sm:$0xff] %v441
      %450 = vst [vmem:[%s221 + $0x38] sm:$0xff] %v442
      %s451 = smul.u32 8, %s15
      %p452 = scmp.lt.s32.totalorder %s451, 15
      %s453 = scalar_select %p452, %s451, 15
      %s454 = smul.addr %s453, 8
      %s455 = scalar_lea.vmem %s4, %s454
      // Predicated region
      $region37: #{a_call__.7} parent=35 // pred_check
        %p456 = pneg %p127
      $region38: #{a_call__.7} parent=35 // pred_check_branch
        %458 = sbr.rel (%p456) target = $region40
      $region39: #{a_call__.7} parent=35 // pred_region
        %s459 = smul.u32 8, %s15
      $region40: #{a_call__.7} parent=35 // pred_fallthru
        _
    $region36: #{a_call__.7} parent=5 // pred_fallthru
      _
    %p460 = scmp.le.s32.totalorder 2, %s10
    // Predicated region
    $region41: #{a_call__.7} parent=5 // pred_check
      %p461 = pneg %p460
    $region42: #{a_call__.7} parent=5 // pred_check_branch
      %463 = sbr.rel (%p461) target = $region44
    $region43: #{a_call__.7} parent=5 // pred_region
      %s464 = ssub.s32 %s10, 2
      // Predicated region
      $region45: #{a_call__.7} parent=43 // pred_check
        %p465 = pneg %p133
      $region46: #{a_call__.7} parent=43 // pred_check_branch
        %467 = sbr.rel (%p465) target = $region48
      $region47: #{a_call__.7} parent=43 // pred_region
        %s468 = smul.u32 8, %s16
        %p469 = scmp.lt.s32.totalorder %s468, 15
        %s470 = scalar_select %p469, %s468, 15
        %s471 = smul.addr %s470, 8
        %s472 = scalar_lea.vmem %s4, %s471
      $region48: #{a_call__.7} parent=43 // pred_fallthru
        _
    $region44: #{a_call__.7} parent=5 // pred_fallthru
      _
  $region6: #{a_call__.7} parent=0 // loop_footer
    %s14 = sadd.s32 1, %s10
  $region7: #{a_call__.7} parent=0 // loop_footer_branch
    %9 = sbr.rel target = $region3
  $region8: #{a_call__.7} parent=0 // loop_exit
    _

</llo_original>
